<compile_context>
chip_gen: v6e
topology: v6e:2x2x1
jax: 0.10.0
libtpu: 0.0.40
codegen_flags: <defaults>
</compile_context>

<pallas_src>
import functools

import jax
import jax.numpy as jnp
from jax import lax
from jax.experimental import pallas as pl
from jax.experimental.pallas import tpu as pltpu


def _round_up(a, b):
    return (a + b - 1) // b * b


def _cls_ce_kernel(cls_ref, tgt_ref, out_ref, obj_acc, clf_acc, cnt_acc, *,
                   w_pos, num_classes, br, strip, n_strips, ns_p, ns_total, s_elems):
    p = pl.program_id(1)
    s = pl.program_id(2)
    nominal = p * ns_p + s                        # un-clamped spatial block index
    bi = jnp.minimum(nominal, ns_total - 1)       # must match the in_specs index_map

    @pl.when(s == 0)
    def _init():
        obj_acc[...] = jnp.zeros_like(obj_acc)
        clf_acc[...] = jnp.zeros_like(clf_acc)
        cnt_acc[...] = jnp.zeros_like(cnt_acc)

    @pl.when(nominal < ns_total)                  # skip redundant (clamped) tail blocks
    def _accumulate():
        # Per-position element offset inside a strip (hoisted out of the strip loop).
        row = lax.broadcasted_iota(jnp.int32, (strip, 128), 0)
        lane = lax.broadcasted_iota(jnp.int32, (strip, 128), 1)
        elem_in_strip = row * 128 + lane

        def body(i, carry):
            r0 = pl.multiple_of(i * strip, strip)
            # Tail masking: global element index must be < true spatial size.
            start_elem = (bi * br + i * strip) * 128
            valid = elem_in_strip < (s_elems - start_elem)

            x = cls_ref[0, 0, pl.ds(r0, strip), :].astype(jnp.float32)
            obj_i = tgt_ref[0, 0, pl.ds(r0, strip), :].astype(jnp.int32)
            lbl = tgt_ref[0, 1, pl.ds(r0, strip), :].astype(jnp.int32)

            pos = jnp.logical_and(valid, obj_i == 1)
            y = pos.astype(jnp.float32)           # 0/1 objectness target, tail-masked

            # ---- objectness BCE-with-logits (stable softplus; shared log1p term) ----
            t = jnp.log1p(jnp.exp(-jnp.abs(x)))
            sp_neg = jnp.maximum(-x, 0.0) + t     # softplus(-x) = -log sigmoid(x)
            sp_pos = jnp.maximum(x, 0.0) + t      # softplus(x)  = -log(1 - sigmoid(x))
            obj_term = w_pos * y * sp_neg + (1.0 - y) * sp_pos
            obj_acc[...] += jnp.where(valid, obj_term, 0.0)
            cnt_acc[...] += y                     # y doubles as the positive count

            # ---- masked CE over K class channels (two passes keep live vregs small) --
            m = cls_ref[0, 1, pl.ds(r0, strip), :].astype(jnp.float32)
            # TODO(synk): class labels assumed in [0, K); out-of-range labels use logit 0.
            logit_lbl = jnp.where(lbl == 0, m, 0.0)
            for k in range(1, num_classes):
                ck = cls_ref[0, 1 + k, pl.ds(r0, strip), :].astype(jnp.float32)
                m = jnp.maximum(m, ck)
                logit_lbl = jnp.where(lbl == k, ck, logit_lbl)
            se = jnp.zeros_like(m)
            for k in range(num_classes):
                ck = cls_ref[0, 1 + k, pl.ds(r0, strip), :].astype(jnp.float32)
                se = se + jnp.exp(ck - m)
            ce = (m + jnp.log(se)) - logit_lbl
            clf_acc[...] += jnp.where(pos, ce, 0.0)
            return carry

        lax.fori_loop(0, n_strips, body, 0, unroll=True)

    @pl.when(s == ns_p - 1)
    def _finalize():
        out_ref[0, 0, pl.ds(0, 1), :] = jnp.sum(obj_acc[...], axis=0, keepdims=True)
        out_ref[0, 0, pl.ds(1, 1), :] = jnp.sum(clf_acc[...], axis=0, keepdims=True)
        out_ref[0, 0, pl.ds(2, 1), :] = jnp.sum(cnt_acc[...], axis=0, keepdims=True)


def cls_cross_entropy(cls_output, cls_target, *, w_pos, block_rows=512,
                      vmem_budget_bytes=48 * 1024 * 1024):
    """Pallas equivalent of ClsCrossEntropy.forward.

    cls_output: (B, 1+K, H, W) float (f32 or bf16 — upcast to f32 inside the kernel)
    cls_target: (B, 2, H, W) int (int8/int32; ch0: objectness 0/1, ch1: class label)
    Returns the scalar cls_loss = clf_loss + obj_loss.
    """
    B, C, H, W = cls_output.shape
    K = C - 1
    assert cls_target.shape == (B, 2, H, W)
    S = H * W
    n_total = B * S

    # ---- spatial view (B,C,S) -> (B,C,S128,128); pad at most to a multiple of 128 ----
    S_pad = _round_up(S, 128)
    cls3 = cls_output.reshape(B, C, S)            # free reshape, dtype kept
    tgt3 = cls_target.reshape(B, 2, S)            # no wrapper astype (HBM bytes stay small)
    if S_pad != S:
        cls3 = jnp.pad(cls3, ((0, 0), (0, 0), (0, S_pad - S)))
        tgt3 = jnp.pad(tgt3, ((0, 0), (0, 0), (0, S_pad - S)))
    S128 = S_pad // 128
    cls4 = cls3.reshape(B, C, S128, 128)
    tgt4 = tgt3.reshape(B, 2, S128, 128)

    # ---- spatial tile height (rows of 128 lanes per grid step) -----------------------
    if S128 <= 8:
        br = S128                                  # full-extent block (always legal)
    else:
        br = max(8, min(int(block_rows), S128))
        br -= br % 8
        if br >= 32:
            br -= br % 32                          # bf16 / int8 sublane-pack friendly

    # ---- keep the double-buffered pipeline inside the VMEM budget (v7x: 64 MiB) ------
    cls_b = jnp.dtype(cls_output.dtype).itemsize
    tgt_b = jnp.dtype(cls_target.dtype).itemsize

    def vmem_est(rows):
        per_step = rows * 128 * (C * cls_b + 2 * tgt_b)
        return 2 * per_step + 3 * min(rows, 32) * 128 * 4 + 2 * 3 * 128 * 4

    while br > 32 and vmem_est(br) > vmem_budget_bytes:
        br = max(32, (br // 2) - (br // 2) % 32)

    strip = 32 if br % 32 == 0 else (8 if br % 8 == 0 else br)
    n_strips = br // strip

    ns_total = pl.cdiv(S128, br)                   # spatial blocks per batch element
    # v7x (2 TCs/chip): guarantee a parallel axis of extent >= 2 even when B == 1.
    P = 2 if (B == 1 and ns_total >= 2) else 1
    ns_p = pl.cdiv(ns_total, P)

    if P == 1:
        spatial_block = lambda b, p, s: (b, 0, s, 0)
    else:
        spatial_block = lambda b, p, s: (b, 0, jnp.minimum(p * ns_p + s, ns_total - 1), 0)

    kernel = functools.partial(
        _cls_ce_kernel, w_pos=float(w_pos), num_classes=K, br=br, strip=strip,
        n_strips=n_strips, ns_p=ns_p, ns_total=ns_total, s_elems=S)

    vmem_limit = int(min(max(2 * vmem_est(br), 32 * 1024 * 1024), 64 * 1024 * 1024))

    partials = pl.pallas_call(
        kernel,
        out_shape=jax.ShapeDtypeStruct((B, P, 3, 128), jnp.float32),
        grid=(B, P, ns_p),
        in_specs=[
            pl.BlockSpec((1, C, br, 128), spatial_block),
            pl.BlockSpec((1, 2, br, 128), spatial_block),
        ],
        out_specs=pl.BlockSpec((1, 1, 3, 128), lambda b, p, s: (b, p, 0, 0)),
        scratch_shapes=[pltpu.VMEM((strip, 128), jnp.float32)] * 3,
        compiler_params=pltpu.CompilerParams(
            dimension_semantics=("parallel", "parallel", "arbitrary"),
            vmem_limit_bytes=vmem_limit),
    )(cls4, tgt4)

    sums = jnp.sum(partials, axis=(0, 1, 3))       # (obj_sum, clf_sum, pos_count)
    obj_loss = sums[0] / jnp.float32(n_total)
    clf_loss = sums[1] / sums[2]                   # NaN if zero positives (matches torch)
    return clf_loss + obj_loss


def _reference(cls_output, cls_target, *, w_pos):
    """Pure-JAX mirror of the PyTorch module (for verification)."""
    x = cls_output[:, 0].astype(jnp.float32)
    y = cls_target[:, 0].astype(jnp.float32)
    obj = w_pos * y * jax.nn.softplus(-x) + (1.0 - y) * jax.nn.softplus(x)
    obj_loss = jnp.mean(obj)

    logits = jnp.transpose(cls_output[:, 1:], (0, 2, 3, 1)).astype(jnp.float32)
    lbl = cls_target[:, 1].astype(jnp.int32)
    log_p = jax.nn.log_softmax(logits, axis=-1)
    ce = -jnp.take_along_axis(log_p, lbl[..., None], axis=-1)[..., 0]
    pos = cls_target[:, 0] == 1
    clf_loss = jnp.sum(jnp.where(pos, ce, 0.0)) / jnp.sum(pos.astype(jnp.float32))
    return clf_loss + obj_loss


if __name__ == "__main__":
    key = jax.random.PRNGKey(0)
    w_pos = 3.0

    def make_inputs(k, B, K, H, W, cls_dtype=jnp.float32, tgt_dtype=jnp.int32):
        C = 1 + K
        k1, k2, k3 = jax.random.split(k, 3)
        cls_output = jax.random.normal(k1, (B, C, H, W), dtype=jnp.float32).astype(cls_dtype)
        obj_tgt = jax.random.bernoulli(k2, 0.3, (B, H, W)).astype(jnp.int32)
        obj_tgt = obj_tgt.at[0, 0, 0].set(1)       # guarantee >= 1 positive
        cls_lbl = jax.random.randint(k3, (B, H, W), 0, K, dtype=jnp.int32)
        cls_target = jnp.stack([obj_tgt, cls_lbl], axis=1).astype(tgt_dtype)
        return cls_output, cls_target

    k1, k2, k3 = jax.random.split(key, 3)

    # 1) f32 logits / int32 targets; S multiple of 128 (no pad, single small block).
    co, ct = make_inputs(k1, 2, 4, 16, 16)
    loss = cls_cross_entropy(co, ct, w_pos=w_pos)
    jax.block_until_ready(loss)
    ref = _reference(co, ct, w_pos=w_pos)
    assert jnp.allclose(loss, ref, rtol=1e-5, atol=1e-5), (loss, ref)

    # 2) bf16 logits / int8 targets (compact HBM bytes), B=1 so the 2-way parallel
    #    spatial split is exercised, odd block count exercises the clamped/skipped tail
    #    step, and a partial last row-tile block exercises in-kernel masking (no pad).
    co2, ct2 = make_inputs(k2, 1, 4, 64, 80, cls_dtype=jnp.bfloat16, tgt_dtype=jnp.int8)
    loss2 = cls_cross_entropy(co2, ct2, w_pos=w_pos, block_rows=16)
    jax.block_until_ready(loss2)
    ref2 = _reference(co2, ct2, w_pos=w_pos)
    assert jnp.allclose(loss2, ref2, rtol=1e-4, atol=1e-4), (loss2, ref2)

    # 3) Ragged spatial size (S=100 padded only to one 128-lane tile, tail masked).
    co3, ct3 = make_inputs(k3, 2, 3, 10, 10, tgt_dtype=jnp.int8)
    loss3 = cls_cross_entropy(co3, ct3, w_pos=w_pos)
    jax.block_until_ready(loss3)
    ref3 = _reference(co3, ct3, w_pos=w_pos)
    assert jnp.allclose(loss3, ref3, rtol=1e-5, atol=1e-5), (loss3, ref3)

    print("KERNEL_OK")
</pallas_src>

<mosaic_0001>
module attributes {stable_mosaic.version = 11 : i64} {
  func.func @_cls_ce_kernel(%arg0: i32, %arg1: i32, %arg2: i32, %arg3: memref<1x5x2x128xf32, #tpu.memory_space<vmem>>, %arg4: memref<1x2x2x128xi32, #tpu.memory_space<vmem>>, %arg5: memref<1x1x3x128xf32, #tpu.memory_space<vmem>>, %arg6: memref<2x128xf32, #tpu.memory_space<vmem>>, %arg7: memref<2x128xf32, #tpu.memory_space<vmem>>, %arg8: memref<2x128xf32, #tpu.memory_space<vmem>>) attributes {dimension_semantics = [#tpu.dimension_semantics<parallel>, #tpu.dimension_semantics<parallel>, #tpu.dimension_semantics<arbitrary>], iteration_bounds = array<i64: 2, 1, 1>, scalar_prefetch = 0 : i64, scratch_operands = 3 : i64, tpu.core_type = #tpu.core_type<tc>, window_params = [{transform_indices = @transform_0, window_bounds = array<i64: 1, 5, 2, 128>}, {transform_indices = @transform_1, window_bounds = array<i64: 1, 2, 2, 128>}, {transform_indices = @transform_2, window_bounds = array<i64: 1, 1, 3, 128>}]} {
    %c1_i32 = arith.constant 1 : i32
    %0 = arith.muli %arg1, %c1_i32 : i32
    %1 = arith.addi %0, %arg2 : i32
    %c0_i32 = arith.constant 0 : i32
    %2 = arith.minsi %1, %c0_i32 : i32
    %c0_i32_0 = arith.constant 0 : i32
    %3 = arith.cmpi eq, %arg2, %c0_i32_0 : i32
    %4 = arith.extui %3 : i1 to i32
    %c0_i32_1 = arith.constant 0 : i32
    %5 = arith.cmpi ne, %4, %c0_i32_1 : i32
    scf.if %5 {
      %cst = arith.constant 0.000000e+00 : f32
      %12 = vector.broadcast %cst : f32 to vector<2x128xf32>
      %c0 = arith.constant 0 : index
      %c0_6 = arith.constant 0 : index
      %13 = vector.load %arg6[%c0, %c0_6] : memref<2x128xf32, #tpu.memory_space<vmem>>, vector<2x128xf32>
      tpu.vector_store %arg6[%c0, %c0_6], %12 {strides = array<i32>} : memref<2x128xf32, #tpu.memory_space<vmem>>, vector<2x128xf32>,
      %cst_7 = arith.constant 0.000000e+00 : f32
      %14 = vector.broadcast %cst_7 : f32 to vector<2x128xf32>
      %c0_8 = arith.constant 0 : index
      %c0_9 = arith.constant 0 : index
      %15 = vector.load %arg7[%c0_8, %c0_9] : memref<2x128xf32, #tpu.memory_space<vmem>>, vector<2x128xf32>
      tpu.vector_store %arg7[%c0_8, %c0_9], %14 {strides = array<i32>} : memref<2x128xf32, #tpu.memory_space<vmem>>, vector<2x128xf32>,
      %cst_10 = arith.constant 0.000000e+00 : f32
      %16 = vector.broadcast %cst_10 : f32 to vector<2x128xf32>
      %c0_11 = arith.constant 0 : index
      %c0_12 = arith.constant 0 : index
      %17 = vector.load %arg8[%c0_11, %c0_12] : memref<2x128xf32, #tpu.memory_space<vmem>>, vector<2x128xf32>
      tpu.vector_store %arg8[%c0_11, %c0_12], %16 {strides = array<i32>} : memref<2x128xf32, #tpu.memory_space<vmem>>, vector<2x128xf32>,
    } else {
    }
    %c1_i32_2 = arith.constant 1 : i32
    %6 = arith.cmpi slt, %1, %c1_i32_2 : i32
    %7 = arith.extui %6 : i1 to i32
    %c0_i32_3 = arith.constant 0 : i32
    %8 = arith.cmpi ne, %7, %c0_i32_3 : i32
    scf.if %8 {
      %12 = tpu.iota {dimensions = array<i32: 0>} : vector<2x128xi32>
      %13 = tpu.iota {dimensions = array<i32: 1>} : vector<2x128xi32>
      %c128_i32 = arith.constant 128 : i32
      %14 = vector.broadcast %c128_i32 : i32 to vector<2x128xi32>
      %15 = arith.muli %12, %14 : vector<2x128xi32>
      %16 = arith.addi %15, %13 : vector<2x128xi32>
      %c0_i32_6 = arith.constant 0 : i32
      %c2_i32 = arith.constant 2 : i32
      %17 = arith.muli %c0_i32_6, %c2_i32 : i32
      %18 = tpu.assume_multiple %17, 2 : i32
      %c2_i32_7 = arith.constant 2 : i32
      %19 = arith.muli %2, %c2_i32_7 : i32
      %c2_i32_8 = arith.constant 2 : i32
      %20 = arith.muli %c0_i32_6, %c2_i32_8 : i32
      %21 = arith.addi %19, %20 : i32
      %c128_i32_9 = arith.constant 128 : i32
      %22 = arith.muli %21, %c128_i32_9 : i32
      %c256_i32 = arith.constant 256 : i32
      %23 = arith.subi %c256_i32, %22 : i32
      %24 = vector.broadcast %23 : i32 to vector<2x128xi32>
      %25 = arith.cmpi slt, %16, %24 : vector<2x128xi32>
      %c0 = arith.constant 0 : index
      %c0_10 = arith.constant 0 : index
      %26 = arith.index_cast %18 : i32 to index
      %c0_11 = arith.constant 0 : index
      %27 = vector.load %arg3[%c0, %c0_10, %26, %c0_11] : memref<1x5x2x128xf32, #tpu.memory_space<vmem>>, vector<1x1x2x128xf32>
      %28 = vector.shape_cast %27 : vector<1x1x2x128xf32> to vector<2x128xf32>
      %c0_12 = arith.constant 0 : index
      %c0_13 = arith.constant 0 : index
      %29 = arith.index_cast %18 : i32 to index
      %c0_14 = arith.constant 0 : index
      %30 = vector.load %arg4[%c0_12, %c0_13, %29, %c0_14] : memref<1x2x2x128xi32, #tpu.memory_space<vmem>>, vector<1x1x2x128xi32>
      %31 = vector.shape_cast %30 : vector<1x1x2x128xi32> to vector<2x128xi32>
      %c0_15 = arith.constant 0 : index
      %c1 = arith.constant 1 : index
      %32 = arith.index_cast %18 : i32 to index
      %c0_16 = arith.constant 0 : index
      %33 = vector.load %arg4[%c0_15, %c1, %32, %c0_16] : memref<1x2x2x128xi32, #tpu.memory_space<vmem>>, vector<1x1x2x128xi32>
      %34 = vector.shape_cast %33 : vector<1x1x2x128xi32> to vector<2x128xi32>
      %c1_i32_17 = arith.constant 1 : i32
      %35 = vector.broadcast %c1_i32_17 : i32 to vector<2x128xi32>
      %36 = arith.cmpi eq, %31, %35 : vector<2x128xi32>
      %37 = arith.andi %25, %36 : vector<2x128xi1>
      %38 = arith.extui %37 : vector<2x128xi1> to vector<2x128xi32>
      %39 = arith.sitofp %38 : vector<2x128xi32> to vector<2x128xf32>
      %40 = math.absf %28 : vector<2x128xf32>
      %cst = arith.constant 0.000000e+00 : f32
      %41 = vector.broadcast %cst : f32 to vector<2x128xf32>
      %42 = arith.subf %41, %40 : vector<2x128xf32>
      %43 = math.exp %42 : vector<2x128xf32>
      %44 = math.log1p %43 : vector<2x128xf32>
      %cst_18 = arith.constant 0.000000e+00 : f32
      %45 = vector.broadcast %cst_18 : f32 to vector<2x128xf32>
      %46 = arith.subf %45, %28 : vector<2x128xf32>
      %cst_19 = arith.constant 0.000000e+00 : f32
      %47 = vector.broadcast %cst_19 : f32 to vector<2x128xf32>
      %48 = arith.maximumf %46, %47 : vector<2x128xf32>
      %49 = arith.addf %48, %44 : vector<2x128xf32>
      %cst_20 = arith.constant 0.000000e+00 : f32
      %50 = vector.broadcast %cst_20 : f32 to vector<2x128xf32>
      %51 = arith.maximumf %28, %50 : vector<2x128xf32>
      %52 = arith.addf %51, %44 : vector<2x128xf32>
      %cst_21 = arith.constant 3.000000e+00 : f32
      %53 = vector.broadcast %cst_21 : f32 to vector<2x128xf32>
      %54 = arith.mulf %53, %39 : vector<2x128xf32>
      %55 = arith.mulf %54, %49 : vector<2x128xf32>
      %cst_22 = arith.constant 1.000000e+00 : f32
      %56 = vector.broadcast %cst_22 : f32 to vector<2x128xf32>
      %57 = arith.subf %56, %39 : vector<2x128xf32>
      %58 = arith.mulf %57, %52 : vector<2x128xf32>
      %59 = arith.addf %55, %58 : vector<2x128xf32>
      %c0_23 = arith.constant 0 : index
      %c0_24 = arith.constant 0 : index
      %60 = vector.load %arg6[%c0_23, %c0_24] : memref<2x128xf32, #tpu.memory_space<vmem>>, vector<2x128xf32>
      %cst_25 = arith.constant 0.000000e+00 : f32
      %61 = vector.broadcast %cst_25 : f32 to vector<2x128xf32>
      %62 = arith.select %25, %59, %61 : vector<2x128xi1>, vector<2x128xf32>
      %63 = arith.addf %60, %62 : vector<2x128xf32>
      %c0_26 = arith.constant 0 : index
      %c0_27 = arith.constant 0 : index
      %64 = vector.load %arg6[%c0_26, %c0_27] : memref<2x128xf32, #tpu.memory_space<vmem>>, vector<2x128xf32>
      tpu.vector_store %arg6[%c0_26, %c0_27], %63 {strides = array<i32>} : memref<2x128xf32, #tpu.memory_space<vmem>>, vector<2x128xf32>,
      %c0_28 = arith.constant 0 : index
      %c0_29 = arith.constant 0 : index
      %65 = vector.load %arg8[%c0_28, %c0_29] : memref<2x128xf32, #tpu.memory_space<vmem>>, vector<2x128xf32>
      %66 = arith.addf %65, %39 : vector<2x128xf32>
      %c0_30 = arith.constant 0 : index
      %c0_31 = arith.constant 0 : index
      %67 = vector.load %arg8[%c0_30, %c0_31] : memref<2x128xf32, #tpu.memory_space<vmem>>, vector<2x128xf32>
      tpu.vector_store %arg8[%c0_30, %c0_31], %66 {strides = array<i32>} : memref<2x128xf32, #tpu.memory_space<vmem>>, vector<2x128xf32>,
      %c0_32 = arith.constant 0 : index
      %c1_33 = arith.constant 1 : index
      %68 = arith.index_cast %18 : i32 to index
      %c0_34 = arith.constant 0 : index
      %69 = vector.load %arg3[%c0_32, %c1_33, %68, %c0_34] : memref<1x5x2x128xf32, #tpu.memory_space<vmem>>, vector<1x1x2x128xf32>
      %70 = vector.shape_cast %69 : vector<1x1x2x128xf32> to vector<2x128xf32>
      %c0_i32_35 = arith.constant 0 : i32
      %71 = vector.broadcast %c0_i32_35 : i32 to vector<2x128xi32>
      %72 = arith.cmpi eq, %34, %71 : vector<2x128xi32>
      %cst_36 = arith.constant 0.000000e+00 : f32
      %73 = vector.broadcast %cst_36 : f32 to vector<2x128xf32>
      %74 = arith.select %72, %70, %73 : vector<2x128xi1>, vector<2x128xf32>
      %c0_37 = arith.constant 0 : index
      %c2 = arith.constant 2 : index
      %75 = arith.index_cast %18 : i32 to index
      %c0_38 = arith.constant 0 : index
      %76 = vector.load %arg3[%c0_37, %c2, %75, %c0_38] : memref<1x5x2x128xf32, #tpu.memory_space<vmem>>, vector<1x1x2x128xf32>
      %77 = vector.shape_cast %76 : vector<1x1x2x128xf32> to vector<2x128xf32>
      %78 = arith.maximumf %70, %77 : vector<2x128xf32>
      %c1_i32_39 = arith.constant 1 : i32
      %79 = vector.broadcast %c1_i32_39 : i32 to vector<2x128xi32>
      %80 = arith.cmpi eq, %34, %79 : vector<2x128xi32>
      %81 = arith.select %80, %77, %74 : vector<2x128xi1>, vector<2x128xf32>
      %c0_40 = arith.constant 0 : index
      %c3 = arith.constant 3 : index
      %82 = arith.index_cast %18 : i32 to index
      %c0_41 = arith.constant 0 : index
      %83 = vector.load %arg3[%c0_40, %c3, %82, %c0_41] : memref<1x5x2x128xf32, #tpu.memory_space<vmem>>, vector<1x1x2x128xf32>
      %84 = vector.shape_cast %83 : vector<1x1x2x128xf32> to vector<2x128xf32>
      %85 = arith.maximumf %78, %84 : vector<2x128xf32>
      %c2_i32_42 = arith.constant 2 : i32
      %86 = vector.broadcast %c2_i32_42 : i32 to vector<2x128xi32>
      %87 = arith.cmpi eq, %34, %86 : vector<2x128xi32>
      %88 = arith.select %87, %84, %81 : vector<2x128xi1>, vector<2x128xf32>
      %c0_43 = arith.constant 0 : index
      %c4 = arith.constant 4 : index
      %89 = arith.index_cast %18 : i32 to index
      %c0_44 = arith.constant 0 : index
      %90 = vector.load %arg3[%c0_43, %c4, %89, %c0_44] : memref<1x5x2x128xf32, #tpu.memory_space<vmem>>, vector<1x1x2x128xf32>
      %91 = vector.shape_cast %90 : vector<1x1x2x128xf32> to vector<2x128xf32>
      %92 = arith.maximumf %85, %91 : vector<2x128xf32>
      %c3_i32 = arith.constant 3 : i32
      %93 = vector.broadcast %c3_i32 : i32 to vector<2x128xi32>
      %94 = arith.cmpi eq, %34, %93 : vector<2x128xi32>
      %95 = arith.select %94, %91, %88 : vector<2x128xi1>, vector<2x128xf32>
      %cst_45 = arith.constant 0.000000e+00 : f32
      %96 = vector.broadcast %cst_45 : f32 to vector<2x128xf32>
      %c0_46 = arith.constant 0 : index
      %c1_47 = arith.constant 1 : index
      %97 = arith.index_cast %18 : i32 to index
      %c0_48 = arith.constant 0 : index
      %98 = vector.load %arg3[%c0_46, %c1_47, %97, %c0_48] : memref<1x5x2x128xf32, #tpu.memory_space<vmem>>, vector<1x1x2x128xf32>
      %99 = vector.shape_cast %98 : vector<1x1x2x128xf32> to vector<2x128xf32>
      %100 = arith.subf %99, %92 : vector<2x128xf32>
      %101 = math.exp %100 : vector<2x128xf32>
      %102 = arith.addf %96, %101 : vector<2x128xf32>
      %c0_49 = arith.constant 0 : index
      %c2_50 = arith.constant 2 : index
      %103 = arith.index_cast %18 : i32 to index
      %c0_51 = arith.constant 0 : index
      %104 = vector.load %arg3[%c0_49, %c2_50, %103, %c0_51] : memref<1x5x2x128xf32, #tpu.memory_space<vmem>>, vector<1x1x2x128xf32>
      %105 = vector.shape_cast %104 : vector<1x1x2x128xf32> to vector<2x128xf32>
      %106 = arith.subf %105, %92 : vector<2x128xf32>
      %107 = math.exp %106 : vector<2x128xf32>
      %108 = arith.addf %102, %107 : vector<2x128xf32>
      %c0_52 = arith.constant 0 : index
      %c3_53 = arith.constant 3 : index
      %109 = arith.index_cast %18 : i32 to index
      %c0_54 = arith.constant 0 : index
      %110 = vector.load %arg3[%c0_52, %c3_53, %109, %c0_54] : memref<1x5x2x128xf32, #tpu.memory_space<vmem>>, vector<1x1x2x128xf32>
      %111 = vector.shape_cast %110 : vector<1x1x2x128xf32> to vector<2x128xf32>
      %112 = arith.subf %111, %92 : vector<2x128xf32>
      %113 = math.exp %112 : vector<2x128xf32>
      %114 = arith.addf %108, %113 : vector<2x128xf32>
      %c0_55 = arith.constant 0 : index
      %c4_56 = arith.constant 4 : index
      %115 = arith.index_cast %18 : i32 to index
      %c0_57 = arith.constant 0 : index
      %116 = vector.load %arg3[%c0_55, %c4_56, %115, %c0_57] : memref<1x5x2x128xf32, #tpu.memory_space<vmem>>, vector<1x1x2x128xf32>
      %117 = vector.shape_cast %116 : vector<1x1x2x128xf32> to vector<2x128xf32>
      %118 = arith.subf %117, %92 : vector<2x128xf32>
      %119 = math.exp %118 : vector<2x128xf32>
      %120 = arith.addf %114, %119 : vector<2x128xf32>
      %121 = math.log %120 : vector<2x128xf32>
      %122 = arith.addf %92, %121 : vector<2x128xf32>
      %123 = arith.subf %122, %95 : vector<2x128xf32>
      %c0_58 = arith.constant 0 : index
      %c0_59 = arith.constant 0 : index
      %124 = vector.load %arg7[%c0_58, %c0_59] : memref<2x128xf32, #tpu.memory_space<vmem>>, vector<2x128xf32>
      %cst_60 = arith.constant 0.000000e+00 : f32
      %125 = vector.broadcast %cst_60 : f32 to vector<2x128xf32>
      %126 = arith.select %37, %123, %125 : vector<2x128xi1>, vector<2x128xf32>
      %127 = arith.addf %124, %126 : vector<2x128xf32>
      %c0_61 = arith.constant 0 : index
      %c0_62 = arith.constant 0 : index
      %128 = vector.load %arg7[%c0_61, %c0_62] : memref<2x128xf32, #tpu.memory_space<vmem>>, vector<2x128xf32>
      tpu.vector_store %arg7[%c0_61, %c0_62], %127 {strides = array<i32>} : memref<2x128xf32, #tpu.memory_space<vmem>>, vector<2x128xf32>,
      %c1_i32_63 = arith.constant 1 : i32
    } else {
    }
    %c0_i32_4 = arith.constant 0 : i32
    %9 = arith.cmpi eq, %arg2, %c0_i32_4 : i32
    %10 = arith.extui %9 : i1 to i32
    %c0_i32_5 = arith.constant 0 : i32
    %11 = arith.cmpi ne, %10, %c0_i32_5 : i32
    scf.if %11 {
      %c0 = arith.constant 0 : index
      %c0_6 = arith.constant 0 : index
      %12 = vector.load %arg6[%c0, %c0_6] : memref<2x128xf32, #tpu.memory_space<vmem>>, vector<2x128xf32>
      %cst = arith.constant dense<0.000000e+00> : vector<128xf32>
      %13 = vector.multi_reduction <add>, %12, %cst [0] : vector<2x128xf32> to vector<128xf32>
      %14 = vector.shape_cast %13 : vector<128xf32> to vector<1x128xf32>
      %c0_7 = arith.constant 0 : index
      %c0_8 = arith.constant 0 : index
      %c0_9 = arith.constant 0 : index
      %c0_10 = arith.constant 0 : index
      %15 = vector.load %arg5[%c0_7, %c0_8, %c0_9, %c0_10] : memref<1x1x3x128xf32, #tpu.memory_space<vmem>>, vector<1x1x1x128xf32>
      %16 = vector.shape_cast %15 : vector<1x1x1x128xf32> to vector<1x128xf32>
      %17 = vector.shape_cast %14 : vector<1x128xf32> to vector<1x1x1x128xf32>
      tpu.vector_store %arg5[%c0_7, %c0_8, %c0_9, %c0_10], %17 {strides = array<i32>} : memref<1x1x3x128xf32, #tpu.memory_space<vmem>>, vector<1x1x1x128xf32>,
      %c0_11 = arith.constant 0 : index
      %c0_12 = arith.constant 0 : index
      %18 = vector.load %arg7[%c0_11, %c0_12] : memref<2x128xf32, #tpu.memory_space<vmem>>, vector<2x128xf32>
      %cst_13 = arith.constant dense<0.000000e+00> : vector<128xf32>
      %19 = vector.multi_reduction <add>, %18, %cst_13 [0] : vector<2x128xf32> to vector<128xf32>
      %20 = vector.shape_cast %19 : vector<128xf32> to vector<1x128xf32>
      %c0_14 = arith.constant 0 : index
      %c0_15 = arith.constant 0 : index
      %c1 = arith.constant 1 : index
      %c0_16 = arith.constant 0 : index
      %21 = vector.load %arg5[%c0_14, %c0_15, %c1, %c0_16] : memref<1x1x3x128xf32, #tpu.memory_space<vmem>>, vector<1x1x1x128xf32>
      %22 = vector.shape_cast %21 : vector<1x1x1x128xf32> to vector<1x128xf32>
      %23 = vector.shape_cast %20 : vector<1x128xf32> to vector<1x1x1x128xf32>
      tpu.vector_store %arg5[%c0_14, %c0_15, %c1, %c0_16], %23 {strides = array<i32>} : memref<1x1x3x128xf32, #tpu.memory_space<vmem>>, vector<1x1x1x128xf32>,
      %c0_17 = arith.constant 0 : index
      %c0_18 = arith.constant 0 : index
      %24 = vector.load %arg8[%c0_17, %c0_18] : memref<2x128xf32, #tpu.memory_space<vmem>>, vector<2x128xf32>
      %cst_19 = arith.constant dense<0.000000e+00> : vector<128xf32>
      %25 = vector.multi_reduction <add>, %24, %cst_19 [0] : vector<2x128xf32> to vector<128xf32>
      %26 = vector.shape_cast %25 : vector<128xf32> to vector<1x128xf32>
      %c0_20 = arith.constant 0 : index
      %c0_21 = arith.constant 0 : index
      %c2 = arith.constant 2 : index
      %c0_22 = arith.constant 0 : index
      %27 = vector.load %arg5[%c0_20, %c0_21, %c2, %c0_22] : memref<1x1x3x128xf32, #tpu.memory_space<vmem>>, vector<1x1x1x128xf32>
      %28 = vector.shape_cast %27 : vector<1x1x1x128xf32> to vector<1x128xf32>
      %29 = vector.shape_cast %26 : vector<1x128xf32> to vector<1x1x1x128xf32>
      tpu.vector_store %arg5[%c0_20, %c0_21, %c2, %c0_22], %29 {strides = array<i32>} : memref<1x1x3x128xf32, #tpu.memory_space<vmem>>, vector<1x1x1x128xf32>,
    } else {
    }
    return
  }
  func.func @transform_0(%arg0: i32, %arg1: i32, %arg2: i32) -> (i32, i32, i32, i32) {
    %c0_i32 = arith.constant 0 : i32
    %c0_i32_0 = arith.constant 0 : i32
    %c0_i32_1 = arith.constant 0 : i32
    return %arg0, %c0_i32, %arg2, %c0_i32_0 : i32, i32, i32, i32
  }
  func.func @transform_1(%arg0: i32, %arg1: i32, %arg2: i32) -> (i32, i32, i32, i32) {
    %c0_i32 = arith.constant 0 : i32
    %c0_i32_0 = arith.constant 0 : i32
    %c0_i32_1 = arith.constant 0 : i32
    return %arg0, %c0_i32, %arg2, %c0_i32_0 : i32, i32, i32, i32
  }
  func.func @transform_2(%arg0: i32, %arg1: i32, %arg2: i32) -> (i32, i32, i32, i32) {
    %c0_i32 = arith.constant 0 : i32
    %c0_i32_0 = arith.constant 0 : i32
    %c0_i32_1 = arith.constant 0 : i32
    return %arg0, %arg1, %c0_i32, %c0_i32_0 : i32, i32, i32, i32
  }
}

</mosaic_0001>

<llo_original>
// kernel: tpu_custom_call.1
$region0: #{tpu_custom_call.1}
  #allocation0 [shape = 'u32[]', space=smem, size = 0x4, offset = 0x4, fixed_abs, tag = 'smem constant byte address 0x4 - core index']
  #allocation1 [shape = 'u32[144,128]{1,0:T(1,128)}', space=vmem, size = 0x12000, scoped, tag = 'internal scratch']
  #allocation2 [shape = 'f32[2,128]{1,0:T(2,128)}', space=vmem, size = 0x400, scoped, tag = 'scratch operand']
  #allocation3 [shape = 'f32[2,128]{1,0:T(2,128)}', space=vmem, size = 0x400, scoped, tag = 'scratch operand']
  #allocation4 [shape = 'f32[2,128]{1,0:T(2,128)}', space=vmem, size = 0x400, scoped, tag = 'scratch operand']
  %s0 = inlined_call_operand.hbm [shape: f32[2,5,2,128], index: 0, kind: input, shape index: {}]
  %s1 = inlined_call_operand.hbm [shape: s32[2,2,2,128], index: 1, kind: input, shape index: {}]
  %s2 = inlined_call_operand.vmem [shape: f32[2,1,3,128], index: 2, kind: output, shape index: {}]
  %s3 = sld [smem:[#allocation0]]
  $region61: #{tpu_custom_call.1} parent=0
    _
  %s5 = ssub.s32 1, %s3
  %s6 = scalar_select 0, %s5, %s3
  $region1: #{tpu_custom_call.1} parent=0
    #allocation5 [shape = 'u8[10240]{0}', space=vmem, size = 0x2800, scoped, tag = 'input window, operand 0']
    #allocation6 [shape = 's32[2]{0}', space=sflag, size = 0x8, scoped, tag = 'scoped memory for tpu_custom_call.1']
    #allocation7 [shape = 'u8[4096]{0}', space=vmem, size = 0x1000, scoped, tag = 'input window, operand 1']
    #allocation8 [shape = 's32[2]{0}', space=sflag, size = 0x8, scoped, tag = 'scoped memory for tpu_custom_call.1']
    %7 = vsyncpa [#allocation6], 0
    %s8 = scalar_lea.sflag [#allocation6], 1
    %9 = vsyncpa %s8, 0
    %10 = vsyncpa [#allocation8], 0
    %s11 = scalar_lea.sflag [#allocation8], 1
    %12 = vsyncpa %s11, 0
    loop: start=0, step=1, limit=4
    $region2: #{tpu_custom_call.1} parent=1 // loop_pre_header
      _
    $region3: #{tpu_custom_call.1} parent=1 // loop_header
      %s14 = sphi 0, %s18
      %p15 = scmp.ge.s32.totalorder %s14, 4
      %s21 = sphi 0, %s40
      %s22 = sphi 0, %s36
      %s23 = sphi 0, %s32
      %s24 = sphi 0, %s21
      %s25 = sphi 0, %s22
      %s26 = sphi 0, %s23
      %s27 = sphi 0, %s24
      %s28 = sphi 0, %s25
      %s29 = sphi 0, %s26
      %s45 = sphi 0, %s47
      %s48 = sphi 0, %s45
      %s49 = sphi 0, %s48
      %s65 = sphi 0, %s49
      %s73 = sphi 0, %s75
      %s76 = sphi 0, %s73
      %s77 = sphi 0, %s76
      %s93 = sphi 0, %s77
      %s101 = sphi 0, %s103
      %s104 = sphi 0, %s101
      %s105 = sphi 0, %s104
      %s121 = sphi 0, %s105
    $region4: #{tpu_custom_call.1} parent=1 // loop_header_branch
      %17 = sbr.rel (%p15) target = $region8
    $region5: #{tpu_custom_call.1} parent=1 // loop_body
      %s19 = ssub.s32 %s14, 1
      %s20 = ssub.s32 %s14, 2
      %s30 = sadd.s32 1, %s23
      %p31 = scmp.ge.s32.totalorder %s30, 1
      %s32 = scalar_select %p31, 0, %s30
      %s33 = sadd.s32 1, %s22
      %s34 = scalar_select %p31, %s33, %s22
      %p35 = scmp.ge.s32.totalorder %s34, 1
      %s36 = scalar_select %p35, 0, %s34
      %s37 = sadd.s32 1, %s21
      %s38 = scalar_select %p35, %s37, %s21
      %p39 = scmp.ge.s32.totalorder %s38, 2
      %s40 = scalar_select %p39, 0, %s38
      %s41 = ssub.s32 %s21, %s40
      %s42 = ssub.s32 %s23, %s32
      %s43 = sor.u32 %s41, %s42
      %p44 = scmp.eq.s32.totalorder %s43, 0
      %s46 = sadd.s32 %s45, 1
      %s47 = scalar_select %p44, %s45, %s46
      %p50 = pneg %p44
      %p51 = scmp.eq.s32.totalorder %s14, 1
      %p52 = por %p50, %p51
      %p53 = scmp.ne.s32.totalorder %s45, %s48
      %p54 = scmp.eq.s32.totalorder %s14, 0
      %p55 = por %p53, %p54
      %p56 = scmp.ne.s32.totalorder %s45, %s48
      %p57 = scmp.eq.s32.totalorder %s19, 1
      %p58 = por %p56, %p57
      %p59 = scmp.ne.s32.totalorder %s48, %s49
      %p60 = scmp.eq.s32.totalorder %s19, 0
      %p61 = por %p59, %p60
      %p62 = scmp.ne.s32.totalorder %s48, %s49
      %p63 = scmp.eq.s32.totalorder %s20, 1
      %p64 = por %p62, %p63
      %p66 = scmp.ne.s32.totalorder %s49, %s65
      %p67 = scmp.eq.s32.totalorder %s20, 0
      %p68 = por %p66, %p67
      %s69 = ssub.s32 %s21, %s40
      %s70 = ssub.s32 %s23, %s32
      %s71 = sor.u32 %s69, %s70
      %p72 = scmp.eq.s32.totalorder %s71, 0
      %s74 = sadd.s32 %s73, 1
      %s75 = scalar_select %p72, %s73, %s74
      %p78 = pneg %p72
      %p79 = scmp.eq.s32.totalorder %s14, 1
      %p80 = por %p78, %p79
      %p81 = scmp.ne.s32.totalorder %s73, %s76
      %p82 = scmp.eq.s32.totalorder %s14, 0
      %p83 = por %p81, %p82
      %p84 = scmp.ne.s32.totalorder %s73, %s76
      %p85 = scmp.eq.s32.totalorder %s19, 1
      %p86 = por %p84, %p85
      %p87 = scmp.ne.s32.totalorder %s76, %s77
      %p88 = scmp.eq.s32.totalorder %s19, 0
      %p89 = por %p87, %p88
      %p90 = scmp.ne.s32.totalorder %s76, %s77
      %p91 = scmp.eq.s32.totalorder %s20, 1
      %p92 = por %p90, %p91
      %p94 = scmp.ne.s32.totalorder %s77, %s93
      %p95 = scmp.eq.s32.totalorder %s20, 0
      %p96 = por %p94, %p95
      %s97 = ssub.s32 %s21, %s40
      %s98 = ssub.s32 %s22, %s36
      %s99 = sor.u32 %s97, %s98
      %p100 = scmp.eq.s32.totalorder %s99, 0
      %s102 = sadd.s32 %s101, 1
      %s103 = scalar_select %p100, %s101, %s102
      %p106 = pneg %p100
      %p107 = scmp.eq.s32.totalorder %s14, 1
      %p108 = por %p106, %p107
      %p109 = scmp.ne.s32.totalorder %s101, %s104
      %p110 = scmp.eq.s32.totalorder %s14, 0
      %p111 = por %p109, %p110
      %p112 = scmp.ne.s32.totalorder %s101, %s104
      %p113 = scmp.eq.s32.totalorder %s19, 1
      %p114 = por %p112, %p113
      %p115 = scmp.ne.s32.totalorder %s104, %s105
      %p116 = scmp.eq.s32.totalorder %s19, 0
      %p117 = por %p115, %p116
      %p118 = scmp.ne.s32.totalorder %s104, %s105
      %p119 = scmp.eq.s32.totalorder %s20, 1
      %p120 = por %p118, %p119
      %p122 = scmp.ne.s32.totalorder %s105, %s121
      %p123 = scmp.eq.s32.totalorder %s20, 0
      %p124 = por %p122, %p123
      %p125 = scmp.le.s32.totalorder 1, %s14
      %p126 = scmp.lt.s32.totalorder %s14, 3
      %p127 = pnand %p125, %p126
      %p128 = pneg %p127
      // Predicated region
      $region9: #{tpu_custom_call.1} parent=5 // pred_check
        _
      $region10: #{tpu_custom_call.1} parent=5 // pred_check_branch
        %130 = sbr.rel (%p127) target = $region12
      $region11: #{tpu_custom_call.1} parent=5 // pred_region
        %s131 = ssub.s32 %s14, 1
      $region12: #{tpu_custom_call.1} parent=5 // pred_fallthru
        _
      %p132 = scmp.lt.s32.totalorder %s14, 2
      // Predicated region
      $region13: #{tpu_custom_call.1} parent=5 // pred_check
        %p133 = pneg %p132
      $region14: #{tpu_custom_call.1} parent=5 // pred_check_branch
        %135 = sbr.rel (%p133) target = $region16
      $region15: #{tpu_custom_call.1} parent=5 // pred_region
        // Predicated region
        $region17: #{tpu_custom_call.1} parent=15 // pred_check
          %p136 = pneg %p55
        $region18: #{tpu_custom_call.1} parent=15 // pred_check_branch
          %138 = sbr.rel (%p136) target = $region20
        $region19: #{tpu_custom_call.1} parent=15 // pred_region
          %s139 = sand.u32 %s45, 1
          %s140 = scalar_lea.sflag [#allocation6], %s139
          %s141 = sand.u32 %s45, 1
          %s142 = smul.addr %s141, 10
          %s143 = scalar_lea.vmem [#allocation5], %s142
          %s145 = ssub.s32 160, 160
          %146 = vsyncadd %s140, %s145
          %s147 = smul.addr %s21, 5
          %s148 = sadd.s32 %s23, %s147
          %s149 = smul.addr %s148, 32
          %s150 = scalar_lea.hbm %s0, %s149
          %s151 = sshll.u32 %s143, 4
          %s152 = int_to_ptr.vmem [resolvable:$true] %s151
          %157 = dma.hbm_to_vmem [thread:$0]  %s150, 160, %s152, %s140, 32, 32, 2
        $region20: #{tpu_custom_call.1} parent=15 // pred_fallthru
          _
        // Predicated region
        $region21: #{tpu_custom_call.1} parent=15 // pred_check
          %p158 = pneg %p83
        $region22: #{tpu_custom_call.1} parent=15 // pred_check_branch
          %160 = sbr.rel (%p158) target = $region24
        $region23: #{tpu_custom_call.1} parent=15 // pred_region
          %s161 = sand.u32 %s73, 1
          %s162 = scalar_lea.sflag [#allocation8], %s161
          %s163 = sand.u32 %s73, 1
          %s164 = smul.addr %s163, 4
          %s165 = scalar_lea.vmem [#allocation7], %s164
          %s167 = ssub.s32 64, 64
          %168 = vsyncadd %s162, %s167
          %s169 = smul.addr %s21, 2
          %s170 = sadd.s32 %s23, %s169
          %s171 = smul.addr %s170, 32
          %s172 = scalar_lea.hbm %s1, %s171
          %s173 = sshll.u32 %s165, 4
          %s174 = int_to_ptr.vmem [resolvable:$true] %s173
          %179 = dma.hbm_to_vmem [thread:$0]  %s172, 64, %s174, %s162, 32, 32, 2
        $region24: #{tpu_custom_call.1} parent=15 // pred_fallthru
          _
      $region16: #{tpu_custom_call.1} parent=5 // pred_fallthru
        _
      %p180 = scmp.le.s32.totalorder 1, %s14
      %p181 = scmp.lt.s32.totalorder %s14, 3
      %p182 = pnand %p180, %p181
      %p183 = pneg %p182
      // Predicated region
      $region25: #{tpu_custom_call.1} parent=5 // pred_check
        _
      $region26: #{tpu_custom_call.1} parent=5 // pred_check_branch
        %185 = sbr.rel (%p182) target = $region28
      $region27: #{tpu_custom_call.1} parent=5 // pred_region
        %s186 = ssub.s32 %s14, 1
        %s187 = sand.u32 %s48, 1
        %s188 = scalar_lea.sflag [#allocation6], %s187
        %s189 = sand.u32 %s48, 1
        %s190 = smul.addr %s189, 10
        %s191 = scalar_lea.vmem [#allocation5], %s190
        // Predicated region
        $region29: #{tpu_custom_call.1} parent=27 // pred_check
          %p192 = pneg %p61
        $region30: #{tpu_custom_call.1} parent=27 // pred_check_branch
          %194 = sbr.rel (%p192) target = $region32
        $region31: #{tpu_custom_call.1} parent=27 // pred_region
          %195 = dma.done %s188, 160
        $region32: #{tpu_custom_call.1} parent=27 // pred_fallthru
          _
        %s196 = sand.u32 %s76, 1
        %s197 = scalar_lea.sflag [#allocation8], %s196
        %s198 = sand.u32 %s76, 1
        %s199 = smul.addr %s198, 4
        %s200 = scalar_lea.vmem [#allocation7], %s199
        // Predicated region
        $region33: #{tpu_custom_call.1} parent=27 // pred_check
          %p201 = pneg %p89
        $region34: #{tpu_custom_call.1} parent=27 // pred_check_branch
          %203 = sbr.rel (%p201) target = $region36
        $region35: #{tpu_custom_call.1} parent=27 // pred_region
          %204 = dma.done %s197, 64
        $region36: #{tpu_custom_call.1} parent=27 // pred_fallthru
          _
        %s205 = sand.u32 %s48, 1
        %s206 = scalar_lea.sflag [#allocation6], %s205
        %s207 = sand.u32 %s48, 1
        %s208 = smul.addr %s207, 10
        %s209 = scalar_lea.vmem [#allocation5], %s208
        %p210 = pneg %p61
        %p211 = pneg %p58
        %s212 = sand.u32 %s76, 1
        %s213 = scalar_lea.sflag [#allocation8], %s212
        %s214 = sand.u32 %s76, 1
        %s215 = smul.addr %s214, 4
        %s216 = scalar_lea.vmem [#allocation7], %s215
        %p217 = pneg %p89
        %p218 = pneg %p86
        %p219 = pneg %p117
        %p220 = pneg %p114
        %p221 = scmp.lt.s32.totalorder %s24, 1
        %s222 = scalar_select %p221, %s24, 1
        %p223 = scmp.lt.s32.totalorder %s25, 0
        %s224 = scalar_select %p223, %s25, 0
        %s225 = sadd.s32 %s224, %s222
        %s226 = smul.addr %s225, 4
        %s227 = scalar_lea.vmem %s2, %s226
        %p228 = scmp.lt.s32.totalorder %s24, 1
        %s229 = scalar_select %p228, %s24, 1
        %p230 = scmp.lt.s32.totalorder %s25, 0
        %s231 = scalar_select %p230, %s25, 0
        %s232 = sadd.s32 %s231, %s229
        %s233 = smul.addr %s232, 4
        %s234 = scalar_lea.vmem %s2, %s233
        %s235 = sadd.s32 %s25, %s26
        %p236 = scmp.lt.s32.totalorder %s235, 0
        %s237 = scalar_select %p236, %s235, 0
        %p238 = scmp.eq.s32.totalorder %s26, 0
        // Predicated region
        $region37: #{tpu_custom_call.1} parent=27 // pred_check
          %p239 = pneg %p238
        $region38: #{tpu_custom_call.1} parent=27 // pred_check_branch
          %241 = sbr.rel (%p239) target = $region40
        $region39: #{tpu_custom_call.1} parent=27 // pred_region
          %242 = vst [vmem:[#allocation2] sm:$0x3] 0.0
          %243 = vst [vmem:[#allocation3] sm:$0x3] 0.0
          %244 = vst [vmem:[#allocation4] sm:$0x3] 0.0
        $region40: #{tpu_custom_call.1} parent=27 // pred_fallthru
          _
        %p245 = scmp.lt.s32.totalorder %s235, 1
        // Predicated region
        $region41: #{tpu_custom_call.1} parent=27 // pred_check
          %p246 = pneg %p245
        $region42: #{tpu_custom_call.1} parent=27 // pred_check_branch
          %248 = sbr.rel (%p246) target = $region44
        $region43: #{tpu_custom_call.1} parent=27 // pred_region
          %v249 = vlaneseq
          %v250 = vshrl.u32 %v249, 7
          %v251 = vlaneseq
          %v252 = vand.u32 %v251, 127
          %v253 = vmul.u32 %v250, 128
          %v254 = vadd.s32 %v253, %v252
          %s255 = smul.u32 %s237, 256
          %s256 = ssub.s32 256, %s255
          %v257 = vstv %s256
          %vm258 = vcmp.lt.s32.totalorder %v254, %v257
          %v259 = vld [vmem:[%s191] sm:$0x3]
          %v260 = vld [vmem:[%s200] sm:$0x3]
          %s261 = sadd.s32 0, 2
          %s262 = scalar_lea.vmem %s200, %s261 [#allocation7]
          %v263 = vld [vmem:[%s262] sm:$0x3]
          %vm264 = vcmp.eq.s32.totalorder %v260, 1
          %vm265 = vmand %vm258, %vm264
          %v266 = vsel %vm265, 1, 0
          %v267 = vcvt.s32.f32 %v266
          %v268 = vand.u32 2147483647, %v259
          %v269 = vsub.f32 0.0, %v268
          %v270 = vmul.f32 %v269, 1.442695
          %v271 = vpow.pop %v270
          %v272 = vadd.f32 %v271, 1.0
          %v273 = vlog2.pop %v272
          %v274 = vmul.f32 %v273, 0.6931472
          %v275 = vmul.f32 -0.5, %v271
          %v276 = vadd.f32 %v275, 1.0
          %v277 = vmul.f32 %v276, %v271
          %v278 = vand.u32 2147483647, %v271
          %vm279 = vcmp.lt.f32.partialorder %v278, 0.0004427343
          %v280 = vsel %vm279, %v277, %v274
          %v281 = vsub.f32 0.0, %v259
          %v282 = vmax.f32 %v281, 0.0
          %v283 = vadd.f32 %v282, %v280
          %v284 = vmax.f32 %v259, 0.0
          %v285 = vadd.f32 %v284, %v280
          %v286 = vmul.f32 %v267, 3.0
          %v287 = vmul.f32 %v286, %v283
          %v288 = vsub.f32 1.0, %v267
          %v289 = vmul.f32 %v288, %v285
          %v290 = vadd.f32 %v287, %v289
          %v291 = vld [vmem:[#allocation2] sm:$0x3]
          %v292 = vsel %vm258, %v290, 0.0
          %v293 = vadd.f32 %v291, %v292
          %294 = vst [vmem:[#allocation2] sm:$0x3] %v293
          %v295 = vld [vmem:[#allocation4] sm:$0x3]
          %v296 = vadd.f32 %v295, %v267
          %297 = vst [vmem:[#allocation4] sm:$0x3] %v296
          %s298 = scalar_lea.vmem %s191, %s261 [#allocation5]
          %v299 = vld [vmem:[%s298] sm:$0x3]
          %vm300 = vcmp.eq.s32.totalorder %v263, 0
          %v301 = vsel %vm300, %v299, 0.0
          %s302 = sadd.s32 0, 4
          %s303 = scalar_lea.vmem %s191, %s302 [#allocation5]
          %v304 = vld [vmem:[%s303] sm:$0x3]
          %v305 = vmax.f32 %v299, %v304
          %vm306 = vcmp.eq.s32.totalorder %v263, 1
          %v307 = vsel %vm306, %v304, %v301
          %s308 = sadd.s32 0, 6
          %s309 = scalar_lea.vmem %s191, %s308 [#allocation5]
          %v310 = vld [vmem:[%s309] sm:$0x3]
          %v311 = vmax.f32 %v305, %v310
          %vm312 = vcmp.eq.s32.totalorder %v263, 2
          %v313 = vsel %vm312, %v310, %v307
          %s314 = sadd.s32 0, 8
          %s315 = scalar_lea.vmem %s191, %s314 [#allocation5]
          %v316 = vld [vmem:[%s315] sm:$0x3]
          %v317 = vmax.f32 %v311, %v316
          %vm318 = vcmp.eq.s32.totalorder %v263, 3
          %v319 = vsel %vm318, %v316, %v313
          %v320 = vsub.f32 %v299, %v317
          %v321 = vmul.f32 %v320, 1.442695
          %v322 = vpow.pop %v321
          %v323 = vadd.f32 %v322, 0.0
          %v324 = vsub.f32 %v304, %v317
          %v325 = vmul.f32 %v324, 1.442695
          %v326 = vpow.pop %v325
          %v327 = vadd.f32 %v323, %v326
          %v328 = vsub.f32 %v310, %v317
          %v329 = vmul.f32 %v328, 1.442695
          %v330 = vpow.pop %v329
          %v331 = vadd.f32 %v327, %v330
          %v332 = vsub.f32 %v316, %v317
          %v333 = vmul.f32 %v332, 1.442695
          %v334 = vpow.pop %v333
          %v335 = vadd.f32 %v331, %v334
          %v336 = vlog2.pop %v335
          %v337 = vmul.f32 %v336, 0.6931472
          %v338 = vadd.f32 %v317, %v337
          %v339 = vsub.f32 %v338, %v319
          %v340 = vld [vmem:[#allocation3] sm:$0x3]
          %v341 = vsel %vm265, %v339, 0.0
          %v342 = vadd.f32 %v340, %v341
          %343 = vst [vmem:[#allocation3] sm:$0x3] %v342
        $region44: #{tpu_custom_call.1} parent=27 // pred_fallthru
          _
        // Predicated region
        $region45: #{tpu_custom_call.1} parent=27 // pred_check
          %p344 = pneg %p238
        $region46: #{tpu_custom_call.1} parent=27 // pred_check_branch
          %346 = sbr.rel (%p344) target = $region48
        $region47: #{tpu_custom_call.1} parent=27 // pred_region
          %v347 = vld [vmem:[#allocation2] sm:$0x3]
          %vm348 = vcmask 1041408
          %v349 = vsel %vm348, %v347, 0.0
          %v350 = vrot.slane %v349, 4
          %v351 = vadd.f32 %v349, %v350
          %v352 = vrot.slane %v351, 2
          %v353 = vadd.f32 %v351, %v352
          %v354 = vrot.slane %v353, 1
          %v355 = vadd.f32 %v353, %v354
          %356 = vst [vmem:[%s234] sm:$0x1] %v355
          %v357 = vld [vmem:[#allocation3] sm:$0x3]
          %v358 = vsel %vm348, %v357, 0.0
          %v359 = vrot.slane %v358, 4
          %v360 = vadd.f32 %v358, %v359
          %v361 = vrot.slane %v360, 2
          %v362 = vadd.f32 %v360, %v361
          %v363 = vrot.slane %v362, 1
          %v364 = vadd.f32 %v362, %v363
          %365 = vst [vmem:[%s234 + $0x1] sm:$0x1] %v364
          %v366 = vld [vmem:[#allocation4] sm:$0x3]
          %v367 = vsel %vm348, %v366, 0.0
          %v368 = vrot.slane %v367, 4
          %v369 = vadd.f32 %v367, %v368
          %v370 = vrot.slane %v369, 2
          %v371 = vadd.f32 %v369, %v370
          %v372 = vrot.slane %v371, 1
          %v373 = vadd.f32 %v371, %v372
          %374 = vst [vmem:[%s234 + $0x2] sm:$0x1] %v373
        $region48: #{tpu_custom_call.1} parent=27 // pred_fallthru
          _
        %p375 = scmp.lt.s32.totalorder %s24, 1
        %s376 = scalar_select %p375, %s24, 1
        %p377 = scmp.lt.s32.totalorder %s25, 0
        %s378 = scalar_select %p377, %s25, 0
        %s379 = sadd.s32 %s378, %s376
        %s380 = smul.addr %s379, 4
        %s381 = scalar_lea.vmem %s2, %s380
        // Predicated region
        $region49: #{tpu_custom_call.1} parent=27 // pred_check
          %p382 = pneg %p114
        $region50: #{tpu_custom_call.1} parent=27 // pred_check_branch
          %384 = sbr.rel (%p382) target = $region52
        $region51: #{tpu_custom_call.1} parent=27 // pred_region
          _
        $region52: #{tpu_custom_call.1} parent=27 // pred_fallthru
          _
      $region28: #{tpu_custom_call.1} parent=5 // pred_fallthru
        _
      %p385 = scmp.le.s32.totalorder 2, %s14
      // Predicated region
      $region53: #{tpu_custom_call.1} parent=5 // pred_check
        %p386 = pneg %p385
      $region54: #{tpu_custom_call.1} parent=5 // pred_check_branch
        %388 = sbr.rel (%p386) target = $region56
      $region55: #{tpu_custom_call.1} parent=5 // pred_region
        %s389 = ssub.s32 %s14, 2
        // Predicated region
        $region57: #{tpu_custom_call.1} parent=55 // pred_check
          %p390 = pneg %p120
        $region58: #{tpu_custom_call.1} parent=55 // pred_check_branch
          %392 = sbr.rel (%p390) target = $region60
        $region59: #{tpu_custom_call.1} parent=55 // pred_region
          %p393 = scmp.lt.s32.totalorder %s27, 1
          %s394 = scalar_select %p393, %s27, 1
          %p395 = scmp.lt.s32.totalorder %s28, 0
          %s396 = scalar_select %p395, %s28, 0
          %s397 = sadd.s32 %s396, %s394
          %s398 = smul.addr %s397, 4
          %s399 = scalar_lea.vmem %s2, %s398
        $region60: #{tpu_custom_call.1} parent=55 // pred_fallthru
          _
      $region56: #{tpu_custom_call.1} parent=5 // pred_fallthru
        _
    $region6: #{tpu_custom_call.1} parent=1 // loop_footer
      %s18 = sadd.s32 1, %s14
    $region7: #{tpu_custom_call.1} parent=1 // loop_footer_branch
      %13 = sbr.rel target = $region3
    $region8: #{tpu_custom_call.1} parent=1 // loop_exit
      _
    %400 = vsyncpa [#allocation6], 1
    %s401 = scalar_lea.sflag [#allocation6], 1
    %402 = vsyncpa %s401, 1
    %403 = vsyncpa [#allocation8], 1
    %s404 = scalar_lea.sflag [#allocation8], 1
    %405 = vsyncpa %s404, 1

</llo_original>
